<compile_context>
chip_gen: v7x
topology: tpu7x:2x2x1
jax: 0.10.0
libtpu: 0.0.40
codegen_flags: <defaults>
</compile_context>

<pallas_src>
import functools
import math

import jax
import jax.numpy as jnp
from jax.experimental import pallas as pl
from jax.experimental.pallas import tpu as pltpu


def _gradient_images_kernel(*refs, nd, has_target):
    # refs layout: x_ref, [t_ref], o_ref, acc_ref_0 .. acc_ref_{nd-1}
    if has_target:
        x_ref, t_ref, o_ref = refs[0], refs[1], refs[2]
        acc_refs = refs[3:]
    else:
        x_ref, o_ref = refs[0], refs[1]
        t_ref = None
        acc_refs = refs[2:]

    step = pl.program_id(0)
    last = pl.num_programs(0) - 1

    @pl.when(step == 0)
    def _init():
        for acc in acc_refs:
            acc[...] = jnp.zeros_like(acc)

    # Block is (G, *spatial): G independent (b, c) slices of the full spatial
    # extent.  Finite differences are along the spatial axes 1..nd only, so the
    # leading packing axis never mixes slices.
    x = x_ref[...].astype(jnp.float32)
    t = t_ref[...].astype(jnp.float32) if has_target else None

    rank = nd + 1
    for ax in range(nd):
        axis = ax + 1
        hi = tuple(slice(1, None) if a == axis else slice(None) for a in range(rank))
        lo = tuple(slice(None, -1) if a == axis else slice(None) for a in range(rank))
        d = x[hi] - x[lo]
        if has_target:
            d = d - (t[hi] - t[lo])
        acc_refs[ax][...] += jnp.sum(d * d)

    @pl.when(step == last)
    def _finalize():
        total = jnp.zeros((1, 1), jnp.float32)
        for acc in acc_refs:
            total = total + jnp.sqrt(acc[...])
        o_ref[...] = total


def _pick_group(num_slices: int, slice_elems: int, itemsize: int, n_arrays: int) -> int:
    """Largest divisor of num_slices whose block (all inputs) fits a VMEM budget."""
    budget_bytes = 4 * 1024 * 1024          # per-step input block budget (x2 double-buffered)
    per_slice = max(1, slice_elems * itemsize * n_arrays)
    max_g = max(1, budget_bytes // per_slice)
    for cand in range(min(num_slices, max_g), 0, -1):
        if num_slices % cand == 0:
            return cand
    return 1


def gradient_images(inp: jax.Array, target: jax.Array | None = None) -> jax.Array:
    """Pallas implementation of GradientImages.forward. Returns a 0-d f32 array."""
    if inp.ndim not in (4, 5):
        raise ValueError(f"expected 4-D or 5-D input, got shape {inp.shape}")

    B, C = inp.shape[:2]
    spatial = tuple(inp.shape[2:])           # (H, W) or (D, H, W)
    nd = len(spatial)
    N = B * C
    has_target = target is not None

    x = inp.reshape((N,) + spatial)          # native dtype, no upcast here
    args = [x]
    n_arrays = 1
    if has_target:
        args.append(target.reshape((N,) + spatial))
        n_arrays = 2

    slice_elems = math.prod(spatial)
    itemsize = jnp.dtype(inp.dtype).itemsize
    G = _pick_group(N, slice_elems, itemsize, n_arrays)
    grid = (N // G,)

    block = (G,) + spatial
    index_map = lambda i: (i,) + (0,) * nd
    in_specs = [pl.BlockSpec(block, index_map) for _ in range(n_arrays)]

    kernel = functools.partial(_gradient_images_kernel, nd=nd, has_target=has_target)

    out = pl.pallas_call(
        kernel,
        out_shape=jax.ShapeDtypeStruct((1, 1), jnp.float32),
        grid_spec=pltpu.PrefetchScalarGridSpec(
            num_scalar_prefetch=0,
            grid=grid,
            in_specs=in_specs,
            out_specs=pl.BlockSpec((1, 1), lambda i: (0, 0)),
            scratch_shapes=[pltpu.VMEM((1, 1), jnp.float32) for _ in range(nd)],
        ),
        compiler_params=pltpu.CompilerParams(
            dimension_semantics=("arbitrary",)),
    )(*args)
    return out.reshape(())


def _reference(inp, target):
    """Pure-JAX reference matching the PyTorch module (4-D or 5-D)."""
    nd = inp.ndim - 2
    total = jnp.float32(0.0)
    for ax in range(nd):
        axis = ax + 2
        hi = tuple(slice(1, None) if a == axis else slice(None) for a in range(inp.ndim))
        lo = tuple(slice(None, -1) if a == axis else slice(None) for a in range(inp.ndim))
        d = inp[hi] - inp[lo]
        if target is not None:
            d = d - (target[hi] - target[lo])
        total = total + jnp.sqrt(jnp.sum(d * d))
    return total


if __name__ == "__main__":
    key = jax.random.PRNGKey(0)
    k1, k2, k3, k4 = jax.random.split(key, 4)

    # 4-D case.
    B, C, H, W = 2, 4, 16, 16
    inp4 = jax.random.normal(k1, (B, C, H, W), dtype=jnp.float32)
    tgt4 = jax.random.normal(k2, (B, C, H, W), dtype=jnp.float32)
    res4 = gradient_images(inp4, tgt4)
    jax.block_until_ready(res4)
    ref4 = _reference(inp4, tgt4)
    assert jnp.allclose(res4, ref4, rtol=1e-5, atol=1e-5), (res4, ref4)

    # 5-D case.
    B, C, D, H, W = 2, 2, 4, 16, 16
    inp5 = jax.random.normal(k3, (B, C, D, H, W), dtype=jnp.float32)
    tgt5 = jax.random.normal(k4, (B, C, D, H, W), dtype=jnp.float32)
    res5 = gradient_images(inp5, tgt5)
    jax.block_until_ready(res5)
    ref5 = _reference(inp5, tgt5)
    assert jnp.allclose(res5, ref5, rtol=1e-5, atol=1e-5), (res5, ref5)

    # TODO(synk): Criterion.init() group-routing bookkeeping has no tensor math;
    # only forward() is modeled.
    print("KERNEL_OK")
</pallas_src>

<mosaic_0001>
module attributes {stable_mosaic.version = 11 : i64} {
  func.func @_gradient_images_kernel(%arg0: i32, %arg1: memref<8x16x16xf32, #tpu.memory_space<vmem>>, %arg2: memref<8x16x16xf32, #tpu.memory_space<vmem>>, %arg3: memref<1x1xf32, #tpu.memory_space<vmem>>, %arg4: memref<1x1xf32, #tpu.memory_space<vmem>>, %arg5: memref<1x1xf32, #tpu.memory_space<vmem>>) attributes {dimension_semantics = [#tpu.dimension_semantics<arbitrary>], iteration_bounds = array<i64: 1>, scalar_prefetch = 0 : i64, scratch_operands = 2 : i64, tpu.core_type = #tpu.core_type<tc>, window_params = [{transform_indices = @transform_0, window_bounds = array<i64: 8, 16, 16>}, {transform_indices = @transform_1, window_bounds = array<i64: 8, 16, 16>}, {pipeline_mode = #tpu.pipeline_mode<synchronous>, transform_indices = @transform_2, window_bounds = array<i64: 1, 1>}]} {
    %c0_i32 = arith.constant 0 : i32
    %0 = arith.cmpi eq, %arg0, %c0_i32 : i32
    %1 = arith.extui %0 : i1 to i32
    %c0_i32_0 = arith.constant 0 : i32
    %2 = arith.cmpi ne, %1, %c0_i32_0 : i32
    scf.if %2 {
      %cst_17 = arith.constant 0.000000e+00 : f32
      %40 = vector.broadcast %cst_17 : f32 to vector<1x1xf32>
      %c0_18 = arith.constant 0 : index
      %c0_19 = arith.constant 0 : index
      %41 = vector.load %arg4[%c0_18, %c0_19] : memref<1x1xf32, #tpu.memory_space<vmem>>, vector<1x1xf32>
      tpu.vector_store %arg4[%c0_18, %c0_19], %40 {strides = array<i32>} : memref<1x1xf32, #tpu.memory_space<vmem>>, vector<1x1xf32>,
      %cst_20 = arith.constant 0.000000e+00 : f32
      %42 = vector.broadcast %cst_20 : f32 to vector<1x1xf32>
      %c0_21 = arith.constant 0 : index
      %c0_22 = arith.constant 0 : index
      %43 = vector.load %arg5[%c0_21, %c0_22] : memref<1x1xf32, #tpu.memory_space<vmem>>, vector<1x1xf32>
      tpu.vector_store %arg5[%c0_21, %c0_22], %42 {strides = array<i32>} : memref<1x1xf32, #tpu.memory_space<vmem>>, vector<1x1xf32>,
    } else {
    }
    %c0 = arith.constant 0 : index
    %c0_1 = arith.constant 0 : index
    %c0_2 = arith.constant 0 : index
    %3 = vector.load %arg1[%c0, %c0_1, %c0_2] : memref<8x16x16xf32, #tpu.memory_space<vmem>>, vector<8x16x16xf32>
    %c0_3 = arith.constant 0 : index
    %c0_4 = arith.constant 0 : index
    %c0_5 = arith.constant 0 : index
    %4 = vector.load %arg2[%c0_3, %c0_4, %c0_5] : memref<8x16x16xf32, #tpu.memory_space<vmem>>, vector<8x16x16xf32>
    %5 = vector.extract_strided_slice %3 {offsets = [0, 1, 0], sizes = [8, 15, 16], strides = [1, 1, 1]} : vector<8x16x16xf32> to vector<8x15x16xf32>
    %6 = vector.extract_strided_slice %3 {offsets = [0, 0, 0], sizes = [8, 15, 16], strides = [1, 1, 1]} : vector<8x16x16xf32> to vector<8x15x16xf32>
    %7 = arith.subf %5, %6 : vector<8x15x16xf32>
    %8 = vector.extract_strided_slice %4 {offsets = [0, 1, 0], sizes = [8, 15, 16], strides = [1, 1, 1]} : vector<8x16x16xf32> to vector<8x15x16xf32>
    %9 = vector.extract_strided_slice %4 {offsets = [0, 0, 0], sizes = [8, 15, 16], strides = [1, 1, 1]} : vector<8x16x16xf32> to vector<8x15x16xf32>
    %10 = arith.subf %8, %9 : vector<8x15x16xf32>
    %11 = arith.subf %7, %10 : vector<8x15x16xf32>
    %c0_6 = arith.constant 0 : index
    %c0_7 = arith.constant 0 : index
    %12 = vector.load %arg4[%c0_6, %c0_7] : memref<1x1xf32, #tpu.memory_space<vmem>>, vector<1x1xf32>
    %13 = arith.mulf %11, %11 : vector<8x15x16xf32>
    %14 = vector.shape_cast %13 : vector<8x15x16xf32> to vector<1x8x15x16xf32>
    %cst = arith.constant dense<0.000000e+00> : vector<1xf32>
    %15 = vector.multi_reduction <add>, %14, %cst [1, 2, 3] : vector<1x8x15x16xf32> to vector<1xf32>
    %16 = vector.shape_cast %15 : vector<1xf32> to vector<1x1x1x1xf32>
    %17 = vector.extract %16[0, 0, 0, 0] : f32 from vector<1x1x1x1xf32>
    %18 = vector.broadcast %17 : f32 to vector<1x1xf32>
    %19 = arith.addf %12, %18 : vector<1x1xf32>
    %c0_8 = arith.constant 0 : index
    %c0_9 = arith.constant 0 : index
    %20 = vector.load %arg4[%c0_8, %c0_9] : memref<1x1xf32, #tpu.memory_space<vmem>>, vector<1x1xf32>
    tpu.vector_store %arg4[%c0_8, %c0_9], %19 {strides = array<i32>} : memref<1x1xf32, #tpu.memory_space<vmem>>, vector<1x1xf32>,
    %21 = vector.extract_strided_slice %3 {offsets = [0, 0, 1], sizes = [8, 16, 15], strides = [1, 1, 1]} : vector<8x16x16xf32> to vector<8x16x15xf32>
    %22 = vector.extract_strided_slice %3 {offsets = [0, 0, 0], sizes = [8, 16, 15], strides = [1, 1, 1]} : vector<8x16x16xf32> to vector<8x16x15xf32>
    %23 = arith.subf %21, %22 : vector<8x16x15xf32>
    %24 = vector.extract_strided_slice %4 {offsets = [0, 0, 1], sizes = [8, 16, 15], strides = [1, 1, 1]} : vector<8x16x16xf32> to vector<8x16x15xf32>
    %25 = vector.extract_strided_slice %4 {offsets = [0, 0, 0], sizes = [8, 16, 15], strides = [1, 1, 1]} : vector<8x16x16xf32> to vector<8x16x15xf32>
    %26 = arith.subf %24, %25 : vector<8x16x15xf32>
    %27 = arith.subf %23, %26 : vector<8x16x15xf32>
    %c0_10 = arith.constant 0 : index
    %c0_11 = arith.constant 0 : index
    %28 = vector.load %arg5[%c0_10, %c0_11] : memref<1x1xf32, #tpu.memory_space<vmem>>, vector<1x1xf32>
    %29 = arith.mulf %27, %27 : vector<8x16x15xf32>
    %30 = vector.shape_cast %29 : vector<8x16x15xf32> to vector<1x8x16x15xf32>
    %cst_12 = arith.constant dense<0.000000e+00> : vector<1xf32>
    %31 = vector.multi_reduction <add>, %30, %cst_12 [1, 2, 3] : vector<1x8x16x15xf32> to vector<1xf32>
    %32 = vector.shape_cast %31 : vector<1xf32> to vector<1x1x1x1xf32>
    %33 = vector.extract %32[0, 0, 0, 0] : f32 from vector<1x1x1x1xf32>
    %34 = vector.broadcast %33 : f32 to vector<1x1xf32>
    %35 = arith.addf %28, %34 : vector<1x1xf32>
    %c0_13 = arith.constant 0 : index
    %c0_14 = arith.constant 0 : index
    %36 = vector.load %arg5[%c0_13, %c0_14] : memref<1x1xf32, #tpu.memory_space<vmem>>, vector<1x1xf32>
    tpu.vector_store %arg5[%c0_13, %c0_14], %35 {strides = array<i32>} : memref<1x1xf32, #tpu.memory_space<vmem>>, vector<1x1xf32>,
    %c0_i32_15 = arith.constant 0 : i32
    %37 = arith.cmpi eq, %arg0, %c0_i32_15 : i32
    %38 = arith.extui %37 : i1 to i32
    %c0_i32_16 = arith.constant 0 : i32
    %39 = arith.cmpi ne, %38, %c0_i32_16 : i32
    scf.if %39 {
      %cst_17 = arith.constant 0.000000e+00 : f32
      %40 = vector.broadcast %cst_17 : f32 to vector<1x1xf32>
      %c0_18 = arith.constant 0 : index
      %c0_19 = arith.constant 0 : index
      %41 = vector.load %arg4[%c0_18, %c0_19] : memref<1x1xf32, #tpu.memory_space<vmem>>, vector<1x1xf32>
      %42 = math.sqrt %41 : vector<1x1xf32>
      %43 = arith.addf %40, %42 : vector<1x1xf32>
      %c0_20 = arith.constant 0 : index
      %c0_21 = arith.constant 0 : index
      %44 = vector.load %arg5[%c0_20, %c0_21] : memref<1x1xf32, #tpu.memory_space<vmem>>, vector<1x1xf32>
      %45 = math.sqrt %44 : vector<1x1xf32>
      %46 = arith.addf %43, %45 : vector<1x1xf32>
      %c0_22 = arith.constant 0 : index
      %c0_23 = arith.constant 0 : index
      %47 = vector.load %arg3[%c0_22, %c0_23] : memref<1x1xf32, #tpu.memory_space<vmem>>, vector<1x1xf32>
      tpu.vector_store %arg3[%c0_22, %c0_23], %46 {strides = array<i32>} : memref<1x1xf32, #tpu.memory_space<vmem>>, vector<1x1xf32>,
    } else {
    }
    return
  }
  func.func @transform_0(%arg0: i32) -> (i32, i32, i32) {
    %c0_i32 = arith.constant 0 : i32
    %c0_i32_0 = arith.constant 0 : i32
    %c0_i32_1 = arith.constant 0 : i32
    return %arg0, %c0_i32, %c0_i32_0 : i32, i32, i32
  }
  func.func @transform_1(%arg0: i32) -> (i32, i32, i32) {
    %c0_i32 = arith.constant 0 : i32
    %c0_i32_0 = arith.constant 0 : i32
    %c0_i32_1 = arith.constant 0 : i32
    return %arg0, %c0_i32, %c0_i32_0 : i32, i32, i32
  }
  func.func @transform_2(%arg0: i32) -> (i32, i32) {
    %c0_i32 = arith.constant 0 : i32
    %c0_i32_0 = arith.constant 0 : i32
    %c0_i32_1 = arith.constant 0 : i32
    return %c0_i32, %c0_i32_0 : i32, i32
  }
}

</mosaic_0001>

<llo_original>
// kernel: tpu_custom_call.1
$region0: #{tpu_custom_call.1}
  #allocation0 [shape = 'u32[]', space=smem, size = 0x4, offset = 0x4, fixed_abs, tag = 'smem constant byte address 0x4 - core index']
  #allocation1 [shape = 'u32[144,128]{1,0:T(1,128)}', space=vmem, size = 0x12000, scoped, tag = 'internal scratch']
  #allocation2 [shape = 'f32[1,1]{1,0:T(1,128)}', space=vmem, size = 0x200, scoped, tag = 'scratch operand']
  #allocation3 [shape = 'f32[1,1]{1,0:T(1,128)}', space=vmem, size = 0x200, scoped, tag = 'scratch operand']
  %s0 = inlined_call_operand.hbm [shape: f32[8,16,16], index: 0, kind: input, shape index: {}]
  %s1 = inlined_call_operand.hbm [shape: f32[8,16,16], index: 1, kind: input, shape index: {}]
  %s2 = inlined_call_operand.hbm [shape: f32[1,1], index: 2, kind: output, shape index: {}]
  %s3 = sld [smem:[#allocation0]]
  $region34: #{tpu_custom_call.1} parent=0
    _
  %s5 = ssub.s32 1, %s3
  %s6 = scalar_select 0, %s5, %s3
  $region1: #{tpu_custom_call.1} parent=0
    #allocation4 [shape = 'u8[65536]{0}', space=vmem, size = 0x10000, scoped, tag = 'input window, operand 0, single buffered']
    #allocation5 [shape = 's32[1]{0}', space=sflag, size = 0x4, scoped, tag = 'scoped memory for tpu_custom_call.1']
    #allocation6 [shape = 's32[1]{0}', space=sflag, size = 0x4, scoped, tag = 'scoped memory for tpu_custom_call.1']
    #allocation7 [shape = 'u8[65536]{0}', space=vmem, size = 0x10000, scoped, tag = 'input window, operand 1, single buffered']
    #allocation8 [shape = 's32[1]{0}', space=sflag, size = 0x4, scoped, tag = 'scoped memory for tpu_custom_call.1']
    #allocation9 [shape = 'u8[512]{0}', space=vmem, size = 0x400, scoped, tag = 'output window, operand 0, single buffered']
    %7 = vsyncpa [#allocation5], 0
    %8 = vsyncpa [#allocation8], 0
    %9 = vsyncpa [#allocation6], 0
    // Predicated region
    $region2: #{tpu_custom_call.1} parent=1 // pred_check
      _
    $region3: #{tpu_custom_call.1} parent=1 // pred_check_branch
      %11 = sbr.rel (0) target = $region5
    $region4: #{tpu_custom_call.1} parent=1 // pred_region
      %s13 = ssub.s32 2048, 2048
      %14 = vsyncadd [#allocation5], %s13
      %s15 = sshll.u32 [#allocation4], 4
      %s16 = int_to_ptr.vmem [resolvable:$true] %s15
      %21 = dma.hbm_to_vmem [thread:$0]  %s0, 2048, %s16, [#allocation5], 128, 128, 8
    $region5: #{tpu_custom_call.1} parent=1 // pred_fallthru
      _
    // Predicated region
    $region6: #{tpu_custom_call.1} parent=1 // pred_check
      _
    $region7: #{tpu_custom_call.1} parent=1 // pred_check_branch
      %23 = sbr.rel (0) target = $region9
    $region8: #{tpu_custom_call.1} parent=1 // pred_region
      %s25 = ssub.s32 2048, 2048
      %26 = vsyncadd [#allocation8], %s25
      %s27 = sshll.u32 [#allocation7], 4
      %s28 = int_to_ptr.vmem [resolvable:$true] %s27
      %33 = dma.hbm_to_vmem [thread:$0]  %s1, 2048, %s28, [#allocation8], 128, 128, 8
    $region9: #{tpu_custom_call.1} parent=1 // pred_fallthru
      _
    // Predicated region
    $region10: #{tpu_custom_call.1} parent=1 // pred_check
      _
    $region11: #{tpu_custom_call.1} parent=1 // pred_check_branch
      %35 = sbr.rel (0) target = $region13
    $region12: #{tpu_custom_call.1} parent=1 // pred_region
      %36 = dma.done [#allocation5], 2048
    $region13: #{tpu_custom_call.1} parent=1 // pred_fallthru
      _
    // Predicated region
    $region14: #{tpu_custom_call.1} parent=1 // pred_check
      _
    $region15: #{tpu_custom_call.1} parent=1 // pred_check_branch
      %38 = sbr.rel (0) target = $region17
    $region16: #{tpu_custom_call.1} parent=1 // pred_region
      %39 = dma.done [#allocation8], 2048
    $region17: #{tpu_custom_call.1} parent=1 // pred_fallthru
      _
    %p40 = scmp.eq.s32.totalorder 0, 0
    // Predicated region
    $region18: #{tpu_custom_call.1} parent=1 // pred_check
      %p41 = pneg %p40
    $region19: #{tpu_custom_call.1} parent=1 // pred_check_branch
      %43 = sbr.rel (%p41) target = $region21
    $region20: #{tpu_custom_call.1} parent=1 // pred_region
      %vm44 = vcmask 0
      %45 = vst.msk [vmem:[#allocation2] sm:$0x1] %vm44, 0.0
      %46 = vst.msk [vmem:[#allocation3] sm:$0x1] %vm44, 0.0
    $region21: #{tpu_custom_call.1} parent=1 // pred_fallthru
      _
    %v47 = vld [vmem:[#allocation4] sm:$0xff]
    %v48 = vld [vmem:[#allocation4 + $0x8] sm:$0xff]
    %v49 = vld [vmem:[#allocation4 + $0x10] sm:$0xff]
    %v50 = vld [vmem:[#allocation4 + $0x18] sm:$0xff]
    %v51 = vld [vmem:[#allocation4 + $0x20] sm:$0xff]
    %v52 = vld [vmem:[#allocation4 + $0x28] sm:$0xff]
    %v53 = vld [vmem:[#allocation4 + $0x30] sm:$0xff]
    %v54 = vld [vmem:[#allocation4 + $0x38] sm:$0xff]
    %v55 = vld [vmem:[#allocation4 + $0x40] sm:$0xff]
    %v56 = vld [vmem:[#allocation4 + $0x48] sm:$0xff]
    %v57 = vld [vmem:[#allocation4 + $0x50] sm:$0xff]
    %v58 = vld [vmem:[#allocation4 + $0x58] sm:$0xff]
    %v59 = vld [vmem:[#allocation4 + $0x60] sm:$0xff]
    %v60 = vld [vmem:[#allocation4 + $0x68] sm:$0xff]
    %v61 = vld [vmem:[#allocation4 + $0x70] sm:$0xff]
    %v62 = vld [vmem:[#allocation4 + $0x78] sm:$0xff]
    %v63 = vld [vmem:[#allocation7] sm:$0xff]
    %v64 = vld [vmem:[#allocation7 + $0x8] sm:$0xff]
    %v65 = vld [vmem:[#allocation7 + $0x10] sm:$0xff]
    %v66 = vld [vmem:[#allocation7 + $0x18] sm:$0xff]
    %v67 = vld [vmem:[#allocation7 + $0x20] sm:$0xff]
    %v68 = vld [vmem:[#allocation7 + $0x28] sm:$0xff]
    %v69 = vld [vmem:[#allocation7 + $0x30] sm:$0xff]
    %v70 = vld [vmem:[#allocation7 + $0x38] sm:$0xff]
    %v71 = vld [vmem:[#allocation7 + $0x40] sm:$0xff]
    %v72 = vld [vmem:[#allocation7 + $0x48] sm:$0xff]
    %v73 = vld [vmem:[#allocation7 + $0x50] sm:$0xff]
    %v74 = vld [vmem:[#allocation7 + $0x58] sm:$0xff]
    %v75 = vld [vmem:[#allocation7 + $0x60] sm:$0xff]
    %v76 = vld [vmem:[#allocation7 + $0x68] sm:$0xff]
    %v77 = vld [vmem:[#allocation7 + $0x70] sm:$0xff]
    %v78 = vld [vmem:[#allocation7 + $0x78] sm:$0xff]
    %vm95 = vcmask 1040384
    %v96 = vrot.slane %v47, 7
    %v97 = vrot.slane %v48, 7
    %v98 = vsel %vm95, %v96, %v97
    %v99 = vrot.slane %v49, 7
    %v100 = vrot.slane %v50, 7
    %v101 = vsel %vm95, %v99, %v100
    %v102 = vrot.slane %v51, 7
    %v103 = vrot.slane %v52, 7
    %v104 = vsel %vm95, %v102, %v103
    %v105 = vrot.slane %v53, 7
    %v106 = vrot.slane %v54, 7
    %v107 = vsel %vm95, %v105, %v106
    %v108 = vrot.slane %v55, 7
    %v109 = vrot.slane %v56, 7
    %v110 = vsel %vm95, %v108, %v109
    %v111 = vrot.slane %v57, 7
    %v112 = vrot.slane %v58, 7
    %v113 = vsel %vm95, %v111, %v112
    %v114 = vrot.slane %v59, 7
    %v115 = vrot.slane %v60, 7
    %v116 = vsel %vm95, %v114, %v115
    %v117 = vrot.slane %v61, 7
    %v118 = vrot.slane %v62, 7
    %v119 = vsel %vm95, %v117, %v118
    %v136 = vsub.f32 %v47, %v96
    %v137 = vsub.f32 %v48, %v98
    %v138 = vsub.f32 %v49, %v99
    %v139 = vsub.f32 %v50, %v101
    %v140 = vsub.f32 %v51, %v102
    %v141 = vsub.f32 %v52, %v104
    %v142 = vsub.f32 %v53, %v105
    %v143 = vsub.f32 %v54, %v107
    %v144 = vsub.f32 %v55, %v108
    %v145 = vsub.f32 %v56, %v110
    %v146 = vsub.f32 %v57, %v111
    %v147 = vsub.f32 %v58, %v113
    %v148 = vsub.f32 %v59, %v114
    %v149 = vsub.f32 %v60, %v116
    %v150 = vsub.f32 %v61, %v117
    %v151 = vsub.f32 %v62, %v119
    %v168 = vrot.slane %v63, 7
    %v169 = vrot.slane %v64, 7
    %v170 = vsel %vm95, %v168, %v169
    %v171 = vrot.slane %v65, 7
    %v172 = vrot.slane %v66, 7
    %v173 = vsel %vm95, %v171, %v172
    %v174 = vrot.slane %v67, 7
    %v175 = vrot.slane %v68, 7
    %v176 = vsel %vm95, %v174, %v175
    %v177 = vrot.slane %v69, 7
    %v178 = vrot.slane %v70, 7
    %v179 = vsel %vm95, %v177, %v178
    %v180 = vrot.slane %v71, 7
    %v181 = vrot.slane %v72, 7
    %v182 = vsel %vm95, %v180, %v181
    %v183 = vrot.slane %v73, 7
    %v184 = vrot.slane %v74, 7
    %v185 = vsel %vm95, %v183, %v184
    %v186 = vrot.slane %v75, 7
    %v187 = vrot.slane %v76, 7
    %v188 = vsel %vm95, %v186, %v187
    %v189 = vrot.slane %v77, 7
    %v190 = vrot.slane %v78, 7
    %v191 = vsel %vm95, %v189, %v190
    %v208 = vsub.f32 %v63, %v168
    %v209 = vsub.f32 %v64, %v170
    %v210 = vsub.f32 %v65, %v171
    %v211 = vsub.f32 %v66, %v173
    %v212 = vsub.f32 %v67, %v174
    %v213 = vsub.f32 %v68, %v176
    %v214 = vsub.f32 %v69, %v177
    %v215 = vsub.f32 %v70, %v179
    %v216 = vsub.f32 %v71, %v180
    %v217 = vsub.f32 %v72, %v182
    %v218 = vsub.f32 %v73, %v183
    %v219 = vsub.f32 %v74, %v185
    %v220 = vsub.f32 %v75, %v186
    %v221 = vsub.f32 %v76, %v188
    %v222 = vsub.f32 %v77, %v189
    %v223 = vsub.f32 %v78, %v191
    %v224 = vsub.f32 %v136, %v208
    %v225 = vsub.f32 %v137, %v209
    %v226 = vsub.f32 %v138, %v210
    %v227 = vsub.f32 %v139, %v211
    %v228 = vsub.f32 %v140, %v212
    %v229 = vsub.f32 %v141, %v213
    %v230 = vsub.f32 %v142, %v214
    %v231 = vsub.f32 %v143, %v215
    %v232 = vsub.f32 %v144, %v216
    %v233 = vsub.f32 %v145, %v217
    %v234 = vsub.f32 %v146, %v218
    %v235 = vsub.f32 %v147, %v219
    %v236 = vsub.f32 %v148, %v220
    %v237 = vsub.f32 %v149, %v221
    %v238 = vsub.f32 %v150, %v222
    %v239 = vsub.f32 %v151, %v223
    %v240 = vld [vmem:[#allocation2] sm:$0x1]
    %v241 = vmul.f32 %v224, %v224
    %v242 = vmul.f32 %v225, %v225
    %v243 = vmul.f32 %v226, %v226
    %v244 = vmul.f32 %v227, %v227
    %v245 = vmul.f32 %v228, %v228
    %v246 = vmul.f32 %v229, %v229
    %v247 = vmul.f32 %v230, %v230
    %v248 = vmul.f32 %v231, %v231
    %v249 = vmul.f32 %v232, %v232
    %v250 = vmul.f32 %v233, %v233
    %v251 = vmul.f32 %v234, %v234
    %v252 = vmul.f32 %v235, %v235
    %v253 = vmul.f32 %v236, %v236
    %v254 = vmul.f32 %v237, %v237
    %v255 = vmul.f32 %v238, %v238
    %v256 = vmul.f32 %v239, %v239
    %vm273 = vcmask 1046528
    %v274 = vrot.slane %v241, 1
    %v275 = vrot.slane %v242, 1
    %v276 = vsel %vm273, %v274, %v275
    %v277 = vrot.slane %v243, 1
    %v278 = vrot.slane %v244, 1
    %v279 = vsel %vm273, %v277, %v278
    %v280 = vrot.slane %v245, 1
    %v281 = vrot.slane %v246, 1
    %v282 = vsel %vm273, %v280, %v281
    %v283 = vrot.slane %v247, 1
    %v284 = vrot.slane %v248, 1
    %v285 = vsel %vm273, %v283, %v284
    %v286 = vrot.slane %v249, 1
    %v287 = vrot.slane %v250, 1
    %v288 = vsel %vm273, %v286, %v287
    %v289 = vrot.slane %v251, 1
    %v290 = vrot.slane %v252, 1
    %v291 = vsel %vm273, %v289, %v290
    %v292 = vrot.slane %v253, 1
    %v293 = vrot.slane %v254, 1
    %v294 = vsel %vm273, %v292, %v293
    %v295 = vrot.slane %v255, 1
    %v296 = vrot.slane %v256, 1
    %v297 = vsel %vm273, %v295, %v296
    %vm314 = vcmask 130048
    %v315 = vsel %vm314, %v276, 0.0
    %vm316 = vcmask 129024
    %v317 = vsel %vm316, %v275, 0.0
    %v318 = vadd.f32 %v315, %v317
    %v319 = vsel %vm314, %v279, 0.0
    %v320 = vadd.f32 %v318, %v319
    %v321 = vsel %vm316, %v278, 0.0
    %v322 = vadd.f32 %v320, %v321
    %v323 = vsel %vm314, %v282, 0.0
    %v324 = vadd.f32 %v322, %v323
    %v325 = vsel %vm316, %v281, 0.0
    %v326 = vadd.f32 %v324, %v325
    %v327 = vsel %vm314, %v285, 0.0
    %v328 = vadd.f32 %v326, %v327
    %v329 = vsel %vm316, %v284, 0.0
    %v330 = vadd.f32 %v328, %v329
    %v331 = vsel %vm314, %v288, 0.0
    %v332 = vadd.f32 %v330, %v331
    %v333 = vsel %vm316, %v287, 0.0
    %v334 = vadd.f32 %v332, %v333
    %v335 = vsel %vm314, %v291, 0.0
    %v336 = vadd.f32 %v334, %v335
    %v337 = vsel %vm316, %v290, 0.0
    %v338 = vadd.f32 %v336, %v337
    %v339 = vsel %vm314, %v294, 0.0
    %v340 = vadd.f32 %v338, %v339
    %v341 = vsel %vm316, %v293, 0.0
    %v342 = vadd.f32 %v340, %v341
    %v343 = vsel %vm314, %v297, 0.0
    %v344 = vadd.f32 %v342, %v343
    %v345 = vsel %vm316, %v296, 0.0
    %v346 = vadd.f32 %v344, %v345
    %347 = vadd.xlane.f32.xlu0 %v346
    %v348 = vpop.xlane.xlu0 %347
    %v349 = vrot.slane %v348, 4
    %v350 = vadd.f32 %v348, %v349
    %v351 = vrot.slane %v350, 2
    %v352 = vadd.f32 %v350, %v351
    %v353 = vrot.slane %v352, 1
    %v354 = vadd.f32 %v352, %v353
    %s355 = vtos %v354
    %v356 = vstv %s355
    %v357 = vadd.f32 %v240, %v356
    %vm358 = vcmask 0
    %359 = vst.msk [vmem:[#allocation2] sm:$0x1] %vm358, %v357
    %360 = vrot.lane.b32.xlu0 %v47, 1
    %v361 = vpop.permute.xlu0 %360
    %362 = vrot.lane.b32.xlu0 %v48, 1
    %v363 = vpop.permute.xlu0 %362
    %364 = vrot.lane.b32.xlu0 %v49, 1
    %v365 = vpop.permute.xlu0 %364
    %366 = vrot.lane.b32.xlu0 %v50, 1
    %v367 = vpop.permute.xlu0 %366
    %368 = vrot.lane.b32.xlu0 %v51, 1
    %v369 = vpop.permute.xlu0 %368
    %370 = vrot.lane.b32.xlu0 %v52, 1
    %v371 = vpop.permute.xlu0 %370
    %372 = vrot.lane.b32.xlu0 %v53, 1
    %v373 = vpop.permute.xlu0 %372
    %374 = vrot.lane.b32.xlu0 %v54, 1
    %v375 = vpop.permute.xlu0 %374
    %376 = vrot.lane.b32.xlu0 %v55, 1
    %v377 = vpop.permute.xlu0 %376
    %378 = vrot.lane.b32.xlu0 %v56, 1
    %v379 = vpop.permute.xlu0 %378
    %380 = vrot.lane.b32.xlu0 %v57, 1
    %v381 = vpop.permute.xlu0 %380
    %382 = vrot.lane.b32.xlu0 %v58, 1
    %v383 = vpop.permute.xlu0 %382
    %384 = vrot.lane.b32.xlu0 %v59, 1
    %v385 = vpop.permute.xlu0 %384
    %386 = vrot.lane.b32.xlu0 %v60, 1
    %v387 = vpop.permute.xlu0 %386
    %388 = vrot.lane.b32.xlu0 %v61, 1
    %v389 = vpop.permute.xlu0 %388
    %390 = vrot.lane.b32.xlu0 %v62, 1
    %v391 = vpop.permute.xlu0 %390
    %v408 = vsub.f32 %v47, %v361
    %v409 = vsub.f32 %v48, %v363
    %v410 = vsub.f32 %v49, %v365
    %v411 = vsub.f32 %v50, %v367
    %v412 = vsub.f32 %v51, %v369
    %v413 = vsub.f32 %v52, %v371
    %v414 = vsub.f32 %v53, %v373
    %v415 = vsub.f32 %v54, %v375
    %v416 = vsub.f32 %v55, %v377
    %v417 = vsub.f32 %v56, %v379
    %v418 = vsub.f32 %v57, %v381
    %v419 = vsub.f32 %v58, %v383
    %v420 = vsub.f32 %v59, %v385
    %v421 = vsub.f32 %v60, %v387
    %v422 = vsub.f32 %v61, %v389
    %v423 = vsub.f32 %v62, %v391
    %424 = vrot.lane.b32.xlu0 %v63, 1
    %v425 = vpop.permute.xlu0 %424
    %426 = vrot.lane.b32.xlu0 %v64, 1
    %v427 = vpop.permute.xlu0 %426
    %428 = vrot.lane.b32.xlu0 %v65, 1
    %v429 = vpop.permute.xlu0 %428
    %430 = vrot.lane.b32.xlu0 %v66, 1
    %v431 = vpop.permute.xlu0 %430
    %432 = vrot.lane.b32.xlu0 %v67, 1
    %v433 = vpop.permute.xlu0 %432
    %434 = vrot.lane.b32.xlu0 %v68, 1
    %v435 = vpop.permute.xlu0 %434
    %436 = vrot.lane.b32.xlu0 %v69, 1
    %v437 = vpop.permute.xlu0 %436
    %438 = vrot.lane.b32.xlu0 %v70, 1
    %v439 = vpop.permute.xlu0 %438
    %440 = vrot.lane.b32.xlu0 %v71, 1
    %v441 = vpop.permute.xlu0 %440
    %442 = vrot.lane.b32.xlu0 %v72, 1
    %v443 = vpop.permute.xlu0 %442
    %444 = vrot.lane.b32.xlu0 %v73, 1
    %v445 = vpop.permute.xlu0 %444
    %446 = vrot.lane.b32.xlu0 %v74, 1
    %v447 = vpop.permute.xlu0 %446
    %448 = vrot.lane.b32.xlu0 %v75, 1
    %v449 = vpop.permute.xlu0 %448
    %450 = vrot.lane.b32.xlu0 %v76, 1
    %v451 = vpop.permute.xlu0 %450
    %452 = vrot.lane.b32.xlu0 %v77, 1
    %v453 = vpop.permute.xlu0 %452
    %454 = vrot.lane.b32.xlu0 %v78, 1
    %v455 = vpop.permute.xlu0 %454
    %v472 = vsub.f32 %v63, %v425
    %v473 = vsub.f32 %v64, %v427
    %v474 = vsub.f32 %v65, %v429
    %v475 = vsub.f32 %v66, %v431
    %v476 = vsub.f32 %v67, %v433
    %v477 = vsub.f32 %v68, %v435
    %v478 = vsub.f32 %v69, %v437
    %v479 = vsub.f32 %v70, %v439
    %v480 = vsub.f32 %v71, %v441
    %v481 = vsub.f32 %v72, %v443
    %v482 = vsub.f32 %v73, %v445
    %v483 = vsub.f32 %v74, %v447
    %v484 = vsub.f32 %v75, %v449
    %v485 = vsub.f32 %v76, %v451
    %v486 = vsub.f32 %v77, %v453
    %v487 = vsub.f32 %v78, %v455
    %v488 = vsub.f32 %v408, %v472
    %v489 = vsub.f32 %v409, %v473
    %v490 = vsub.f32 %v410, %v474
    %v491 = vsub.f32 %v411, %v475
    %v492 = vsub.f32 %v412, %v476
    %v493 = vsub.f32 %v413, %v477
    %v494 = vsub.f32 %v414, %v478
    %v495 = vsub.f32 %v415, %v479
    %v496 = vsub.f32 %v416, %v480
    %v497 = vsub.f32 %v417, %v481
    %v498 = vsub.f32 %v418, %v482
    %v499 = vsub.f32 %v419, %v483
    %v500 = vsub.f32 %v420, %v484
    %v501 = vsub.f32 %v421, %v485
    %v502 = vsub.f32 %v422, %v486
    %v503 = vsub.f32 %v423, %v487
    %v504 = vld [vmem:[#allocation3] sm:$0x1]
    %v505 = vmul.f32 %v488, %v488
    %v506 = vmul.f32 %v489, %v489
    %v507 = vmul.f32 %v490, %v490
    %v508 = vmul.f32 %v491, %v491
    %v509 = vmul.f32 %v492, %v492
    %v510 = vmul.f32 %v493, %v493
    %v511 = vmul.f32 %v494, %v494
    %v512 = vmul.f32 %v495, %v495
    %v513 = vmul.f32 %v496, %v496
    %v514 = vmul.f32 %v497, %v497
    %v515 = vmul.f32 %v498, %v498
    %v516 = vmul.f32 %v499, %v499
    %v517 = vmul.f32 %v500, %v500
    %v518 = vmul.f32 %v501, %v501
    %v519 = vmul.f32 %v502, %v502
    %v520 = vmul.f32 %v503, %v503
    %537 = vrot.lane.b32.xlu0 %v505, 127
    %v538 = vpop.permute.xlu0 %537
    %539 = vrot.lane.b32.xlu0 %v506, 127
    %v540 = vpop.permute.xlu0 %539
    %541 = vrot.lane.b32.xlu0 %v507, 127
    %v542 = vpop.permute.xlu0 %541
    %543 = vrot.lane.b32.xlu0 %v508, 127
    %v544 = vpop.permute.xlu0 %543
    %545 = vrot.lane.b32.xlu0 %v509, 127
    %v546 = vpop.permute.xlu0 %545
    %547 = vrot.lane.b32.xlu0 %v510, 127
    %v548 = vpop.permute.xlu0 %547
    %549 = vrot.lane.b32.xlu0 %v511, 127
    %v550 = vpop.permute.xlu0 %549
    %551 = vrot.lane.b32.xlu0 %v512, 127
    %v552 = vpop.permute.xlu0 %551
    %553 = vrot.lane.b32.xlu0 %v513, 127
    %v554 = vpop.permute.xlu0 %553
    %555 = vrot.lane.b32.xlu0 %v514, 127
    %v556 = vpop.permute.xlu0 %555
    %557 = vrot.lane.b32.xlu0 %v515, 127
    %v558 = vpop.permute.xlu0 %557
    %559 = vrot.lane.b32.xlu0 %v516, 127
    %v560 = vpop.permute.xlu0 %559
    %561 = vrot.lane.b32.xlu0 %v517, 127
    %v562 = vpop.permute.xlu0 %561
    %563 = vrot.lane.b32.xlu0 %v518, 127
    %v564 = vpop.permute.xlu0 %563
    %565 = vrot.lane.b32.xlu0 %v519, 127
    %v566 = vpop.permute.xlu0 %565
    %567 = vrot.lane.b32.xlu0 %v520, 127
    %v568 = vpop.permute.xlu0 %567
    %vm585 = vcmask 121856
    %v586 = vsel %vm585, %v538, 0.0
    %v587 = vsel %vm585, %v540, 0.0
    %v588 = vadd.f32 %v586, %v587
    %v589 = vsel %vm585, %v542, 0.0
    %v590 = vadd.f32 %v588, %v589
    %v591 = vsel %vm585, %v544, 0.0
    %v592 = vadd.f32 %v590, %v591
    %v593 = vsel %vm585, %v546, 0.0
    %v594 = vadd.f32 %v592, %v593
    %v595 = vsel %vm585, %v548, 0.0
    %v596 = vadd.f32 %v594, %v595
    %v597 = vsel %vm585, %v550, 0.0
    %v598 = vadd.f32 %v596, %v597
    %v599 = vsel %vm585, %v552, 0.0
    %v600 = vadd.f32 %v598, %v599
    %v601 = vsel %vm585, %v554, 0.0
    %v602 = vadd.f32 %v600, %v601
    %v603 = vsel %vm585, %v556, 0.0
    %v604 = vadd.f32 %v602, %v603
    %v605 = vsel %vm585, %v558, 0.0
    %v606 = vadd.f32 %v604, %v605
    %v607 = vsel %vm585, %v560, 0.0
    %v608 = vadd.f32 %v606, %v607
    %v609 = vsel %vm585, %v562, 0.0
    %v610 = vadd.f32 %v608, %v609
    %v611 = vsel %vm585, %v564, 0.0
    %v612 = vadd.f32 %v610, %v611
    %v613 = vsel %vm585, %v566, 0.0
    %v614 = vadd.f32 %v612, %v613
    %v615 = vsel %vm585, %v568, 0.0
    %v616 = vadd.f32 %v614, %v615
    %617 = vadd.xlane.f32.xlu0 %v616
    %v618 = vpop.xlane.xlu0 %617
    %v619 = vrot.slane %v618, 4
    %v620 = vadd.f32 %v618, %v619
    %v621 = vrot.slane %v620, 2
    %v622 = vadd.f32 %v620, %v621
    %v623 = vrot.slane %v622, 1
    %v624 = vadd.f32 %v622, %v623
    %s625 = vtos %v624
    %v626 = vstv %s625
    %v627 = vadd.f32 %v504, %v626
    %628 = vst.msk [vmem:[#allocation3] sm:$0x1] %vm358, %v627
    // Predicated region
    $region22: #{tpu_custom_call.1} parent=1 // pred_check
      %p629 = pneg %p40
    $region23: #{tpu_custom_call.1} parent=1 // pred_check_branch
      %631 = sbr.rel (%p629) target = $region25
    $region24: #{tpu_custom_call.1} parent=1 // pred_region
      %v632 = vld [vmem:[#allocation2] sm:$0x1]
      %v633 = vrsqrt.pop %v632
      %v634 = vmul.f32 %v632, %v633
      %vm635 = vcmp.eq.f32.partialorder %v632, inf
      %v636 = vsel %vm635, %v632, %v634
      %vm637 = vcmp.eq.f32.partialorder %v632, 0.0
      %v638 = vand.u32 %v632, 2147483648
      %v639 = vsel %vm637, %v638, %v636
      %v640 = vadd.f32 %v639, 0.0
      %v641 = vld [vmem:[#allocation3] sm:$0x1]
      %v642 = vrsqrt.pop %v641
      %v643 = vmul.f32 %v641, %v642
      %vm644 = vcmp.eq.f32.partialorder %v641, inf
      %v645 = vsel %vm644, %v641, %v643
      %vm646 = vcmp.eq.f32.partialorder %v641, 0.0
      %v647 = vand.u32 %v641, 2147483648
      %v648 = vsel %vm646, %v647, %v645
      %v649 = vadd.f32 %v640, %v648
      %650 = vst.msk [vmem:[#allocation9] sm:$0x1] %vm358, %v649
    $region25: #{tpu_custom_call.1} parent=1 // pred_fallthru
      _
    // Predicated region
    $region26: #{tpu_custom_call.1} parent=1 // pred_check
      _
    $region27: #{tpu_custom_call.1} parent=1 // pred_check_branch
      %652 = sbr.rel (0) target = $region29
    $region28: #{tpu_custom_call.1} parent=1 // pred_region
      %s654 = ssub.s32 16, 16
      %655 = vsyncadd [#allocation6], %s654
      %s657 = sshll.u32 [#allocation9], 4
      %s658 = int_to_ptr.vmem [resolvable:$true] %s657
      %660 = dma.vmem_to_hbm [thread:$0]  %s658, 16, %s2, [#allocation6]
    $region29: #{tpu_custom_call.1} parent=1 // pred_fallthru
      _
    // Predicated region
    $region30: #{tpu_custom_call.1} parent=1 // pred_check
      _
    $region31: #{tpu_custom_call.1} parent=1 // pred_check_branch
      %662 = sbr.rel (0) target = $region33
    $region32: #{tpu_custom_call.1} parent=1 // pred_region
      %663 = dma.done [#allocation6], 16
    $region33: #{tpu_custom_call.1} parent=1 // pred_fallthru
      _
    %664 = vsyncpa [#allocation5], 1
    %665 = vsyncpa [#allocation8], 1
    %666 = vsyncpa [#allocation6], 1

</llo_original>
